<compile_context>
chip_gen: v7x
topology: tpu7x:2x2x1
jax: 0.10.0
libtpu: 0.0.40
codegen_flags: <defaults>
</compile_context>

<pallas_src>
import jax
import jax.numpy as jnp
from jax.experimental import pallas as pl
from jax.experimental.pallas import tpu as pltpu


def _rows_per_tile(ho, wo, target):
    """Output rows per pass-1 tile: largest divisor m of ho with m*wo <= target,
    preferring tiles whose flattened row count (m*wo) is a multiple of 8."""
    cands = [m for m in range(1, ho + 1) if ho % m == 0 and m * wo <= max(target, wo)]
    aligned = [m for m in cands if (m * wo) % 8 == 0]
    pool = aligned if aligned else cands
    return max(pool) if pool else ho


def unet_down(x, weight, *, compute_dtype=jnp.bfloat16, eps=1e-5):
    """x: (N, Cin, H, W) NCHW; weight: (Cout, Cin, 4, 4) OIHW.
    Returns (N, Cout, H//2, W//2) NCHW, matching the PyTorch UNetDown defaults."""
    N, Cin, H, W = x.shape
    Cout, cin_w, K, K2 = weight.shape
    assert K == 4 and K2 == 4 and cin_w == Cin
    assert H % 2 == 0 and W % 2 == 0, "UNetDown expects even spatial dims"

    Ho, Wo = H // 2, W // 2
    Hs, Ws = Ho + 1, Wo + 1              # space-to-depth extents of the padded input
    HW = Ho * Wo
    F = 8 * Cin                          # folded (dw, ph, pw, c) feature axis

    # ---- XLA-side prep (cheap: ~2x input elements, already in compute dtype). ----
    # output(i, j, o) = sum_dh sum_f w3[dh, f, o] * xw[i + dh, j, f]
    xt = x.astype(compute_dtype).transpose(0, 2, 3, 1)                 # NHWC
    xp = jnp.pad(xt, ((0, 0), (1, 1), (1, 1), (0, 0)))                 # (N, H+2, W+2, Cin)
    xs = xp.reshape(N, Hs, 2, Ws, 2, Cin).transpose(0, 1, 3, 2, 4, 5)  # (n, a, j', ph, pw, c)
    xw = jnp.stack([xs[:, :, :Wo], xs[:, :, 1:]], axis=3)              # (n, a, j, dw, ph, pw, c)
    xw = xw.reshape(N, Hs * Wo, F)                                     # flat rows, pitch Wo

    # Weight: (Cout, Cin, kh, kw) -> (dh, f=(dw,ph,pw,c), Cout_p), lane-dense Cout.
    Cout_p = ((Cout + 127) // 128) * 128
    w3 = weight.reshape(Cout, Cin, 2, 2, 2, 2).transpose(2, 4, 3, 5, 1, 0)
    w3 = w3.reshape(2, F, Cout)
    if Cout_p != Cout:
        w3 = jnp.pad(w3, ((0, 0), (0, 0), (0, Cout_p - Cout)))
    w3 = w3.astype(compute_dtype)

    # ---- Tiling choices. ----
    tco = 256 if Cout_p % 256 == 0 else 128     # channel block: v7x core-parallel, v6e MXU N
    n_co = Cout_p // tco
    m = _rows_per_tile(Ho, Wo, 1024)            # output rows per pass-1 tile
    T = m * Wo                                  # pass-1 tile rows (flattened Ho*Wo)
    n_t = Ho // m
    halo_is_wo = (Wo % 8 == 0)                  # small halo block only if sublane-aligned
    inv_hw = 1.0 / float(HW)

    # ---- Pass 1: conv (2 shifted MXU matmuls) + per-(n, channel) sum / sumsq. ----
    def conv_stats_kernel(xa_ref, xb_ref, w_ref, y_ref, stats_ref, ssum_ref, ssq_ref):
        t = pl.program_id(2)
        last_t = pl.num_programs(2) - 1

        @pl.when(t == 0)
        def _():
            ssum_ref[...] = jnp.zeros_like(ssum_ref)
            ssq_ref[...] = jnp.zeros_like(ssq_ref)

        xa = xa_ref[...]                     # (T, F): xw rows [t*T, (t+1)*T)
        xb = xb_ref[0:Wo, :]                 # (Wo, F): xw rows [(t+1)*T, (t+1)*T + Wo)
        if T > Wo:
            x1 = jnp.concatenate([xa[Wo:, :], xb], axis=0)   # dh=1 tap: shift by +Wo rows
        else:
            x1 = xb
        acc = jnp.dot(xa, w_ref[0], preferred_element_type=jnp.float32)
        acc = acc + jnp.dot(x1, w_ref[1], preferred_element_type=jnp.float32)

        y_ref[...] = acc.astype(y_ref.dtype)
        # One-read stats (var = E[x^2] - E[x]^2 in f32, clamped at finalize).
        ssum_ref[...] += jnp.sum(acc, axis=0, keepdims=True)
        ssq_ref[...] += jnp.sum(acc * acc, axis=0, keepdims=True)

        @pl.when(t == last_t)
        def _():
            mean = ssum_ref[...] * inv_hw
            var = jnp.maximum(ssq_ref[...] * inv_hw - mean * mean, 0.0)
            stats_ref[0:1, :] = mean
            stats_ref[1:2, :] = jax.lax.rsqrt(var + eps)

    if halo_is_wo:
        halo_spec = pl.BlockSpec((pl.Squeezed(), Wo, F),
                                 lambda n, co, t: (n, (t + 1) * m, 0))
    else:
        # Fallback: full-size next block (partial at the edge); only rows [0, Wo) are used.
        halo_spec = pl.BlockSpec((pl.Squeezed(), T, F),
                                 lambda n, co, t: (n, t + 1, 0))

    y, stats = pl.pallas_call(
        conv_stats_kernel,
        out_shape=(jax.ShapeDtypeStruct((N, HW, Cout_p), compute_dtype),
                   jax.ShapeDtypeStruct((N, 2, Cout_p), jnp.float32)),
        grid_spec=pltpu.PrefetchScalarGridSpec(
            num_scalar_prefetch=0,
            grid=(N, n_co, n_t),
            in_specs=[
                pl.BlockSpec((pl.Squeezed(), T, F), lambda n, co, t: (n, t, 0)),
                halo_spec,
                pl.BlockSpec((2, F, tco), lambda n, co, t: (0, 0, co)),  # weight-stationary
            ],
            out_specs=[
                pl.BlockSpec((pl.Squeezed(), T, tco), lambda n, co, t: (n, t, co)),
                pl.BlockSpec((pl.Squeezed(), 2, tco), lambda n, co, t: (n, 0, co)),
            ],
            scratch_shapes=[
                pltpu.VMEM((1, tco), jnp.float32),   # per-channel running sum
                pltpu.VMEM((1, tco), jnp.float32),   # per-channel running sum of squares
            ]),
        compiler_params=pltpu.CompilerParams(
            dimension_semantics=("parallel", "parallel", "arbitrary"),
            vmem_limit_bytes=32 * 1024 * 1024),
    )(xw, xw, w3)

    # ---- Pass 2: (y - mean) * rstd -> LeakyReLU(0.2), fused elementwise store. ----
    T2 = HW if HW <= 2048 else 2048              # big tile, decoupled from pass 1
    n_t2 = pl.cdiv(HW, T2)

    def norm_act_kernel(y_ref, stats_ref, o_ref):
        yv = y_ref[...].astype(jnp.float32)
        mean = stats_ref[0:1, :]
        rstd = stats_ref[1:2, :]
        z = (yv - mean) * rstd
        o_ref[...] = jnp.where(z > 0, z, 0.2 * z).astype(o_ref.dtype)

    out = pl.pallas_call(
        norm_act_kernel,
        out_shape=jax.ShapeDtypeStruct((N, HW, Cout_p), x.dtype),
        grid_spec=pltpu.PrefetchScalarGridSpec(
            num_scalar_prefetch=0,
            grid=(N, n_co, n_t2),
            in_specs=[
                pl.BlockSpec((pl.Squeezed(), T2, tco), lambda n, co, t: (n, t, co)),
                pl.BlockSpec((pl.Squeezed(), 2, tco), lambda n, co, t: (n, 0, co)),
            ],
            out_specs=pl.BlockSpec((pl.Squeezed(), T2, tco),
                                   lambda n, co, t: (n, t, co)),
        ),
        compiler_params=pltpu.CompilerParams(
            dimension_semantics=("parallel", "parallel", "parallel"),
            vmem_limit_bytes=32 * 1024 * 1024),
    )(y, stats)

    # Strip channel padding; back to NCHW to match the PyTorch module.
    out = out[:, :, :Cout].reshape(N, Ho, Wo, Cout).transpose(0, 3, 1, 2)
    return out


def _reference(x, weight, eps=1e-5):
    # Pure-JAX reference for correctness check.
    y = jax.lax.conv_general_dilated(
        x, weight, window_strides=(2, 2), padding=((1, 1), (1, 1)),
        dimension_numbers=("NCHW", "OIHW", "NCHW"),
        precision=jax.lax.Precision.HIGHEST)
    mean = y.mean(axis=(2, 3), keepdims=True)
    var = ((y - mean) ** 2).mean(axis=(2, 3), keepdims=True)
    y = (y - mean) / jnp.sqrt(var + eps)
    return jnp.where(y > 0, y, 0.2 * y)


if __name__ == "__main__":
    key = jax.random.PRNGKey(0)
    kx, kw = jax.random.split(key)

    N, Cin, H, W = 2, 4, 16, 16
    Cout, K = 8, 4

    x = jax.random.normal(kx, (N, Cin, H, W), dtype=jnp.float32)
    fan_in = Cin * K * K
    weight = jax.random.normal(kw, (Cout, Cin, K, K), dtype=jnp.float32) / jnp.sqrt(fan_in)

    ref = _reference(x, weight)

    # f32 path (numerics check; tolerance also covers a reduced-precision f32 MXU dot).
    out_f32 = jax.block_until_ready(unet_down(x, weight, compute_dtype=jnp.float32))
    assert out_f32.shape == (N, Cout, H // 2, W // 2), out_f32.shape
    err_f32 = float(jnp.max(jnp.abs(out_f32 - ref)))
    assert err_f32 < 2e-2, err_f32

    # Performance path: bf16 MXU inputs + bf16 intermediate y, f32 accum/statistics.
    out_bf16 = jax.block_until_ready(unet_down(x, weight, compute_dtype=jnp.bfloat16))
    assert out_bf16.shape == (N, Cout, H // 2, W // 2), out_bf16.shape
    err_bf16 = float(jnp.max(jnp.abs(out_bf16 - ref)))
    assert err_bf16 < 8e-2, err_bf16

    print("KERNEL_OK")
</pallas_src>

<mosaic_0001>
module attributes {stable_mosaic.version = 11 : i64} {
  func.func @conv_stats_kernel(%arg0: i32, %arg1: i32, %arg2: i32, %arg3: memref<1x64x32xf32, #tpu.memory_space<vmem>>, %arg4: memref<1x8x32xf32, #tpu.memory_space<vmem>>, %arg5: memref<2x32x128xf32, #tpu.memory_space<vmem>>, %arg6: memref<1x64x128xf32, #tpu.memory_space<vmem>>, %arg7: memref<1x2x128xf32, #tpu.memory_space<vmem>>, %arg8: memref<1x128xf32, #tpu.memory_space<vmem>>, %arg9: memref<1x128xf32, #tpu.memory_space<vmem>>) attributes {dimension_semantics = [#tpu.dimension_semantics<parallel>, #tpu.dimension_semantics<parallel>, #tpu.dimension_semantics<arbitrary>], iteration_bounds = array<i64: 2, 1, 1>, scalar_prefetch = 0 : i64, scratch_operands = 2 : i64, tpu.core_type = #tpu.core_type<tc>, window_params = [{transform_indices = @transform_0, window_bounds = array<i64: 1, 64, 32>}, {transform_indices = @transform_1, window_bounds = array<i64: 1, 8, 32>}, {transform_indices = @transform_2, window_bounds = array<i64: 2, 32, 128>}, {transform_indices = @transform_3, window_bounds = array<i64: 1, 64, 128>}, {transform_indices = @transform_4, window_bounds = array<i64: 1, 2, 128>}]} {
    %c0_i32 = arith.constant 0 : i32
    %0 = arith.cmpi eq, %arg2, %c0_i32 : i32
    %1 = arith.extui %0 : i1 to i32
    %c0_i32_0 = arith.constant 0 : i32
    %2 = arith.cmpi ne, %1, %c0_i32_0 : i32
    scf.if %2 {
      %cst_27 = arith.constant 0.000000e+00 : f32
      %33 = vector.broadcast %cst_27 : f32 to vector<1x128xf32>
      %c0_28 = arith.constant 0 : index
      %c0_29 = arith.constant 0 : index
      %34 = vector.load %arg8[%c0_28, %c0_29] : memref<1x128xf32, #tpu.memory_space<vmem>>, vector<1x128xf32>
      tpu.vector_store %arg8[%c0_28, %c0_29], %33 {strides = array<i32>} : memref<1x128xf32, #tpu.memory_space<vmem>>, vector<1x128xf32>,
      %cst_30 = arith.constant 0.000000e+00 : f32
      %35 = vector.broadcast %cst_30 : f32 to vector<1x128xf32>
      %c0_31 = arith.constant 0 : index
      %c0_32 = arith.constant 0 : index
      %36 = vector.load %arg9[%c0_31, %c0_32] : memref<1x128xf32, #tpu.memory_space<vmem>>, vector<1x128xf32>
      tpu.vector_store %arg9[%c0_31, %c0_32], %35 {strides = array<i32>} : memref<1x128xf32, #tpu.memory_space<vmem>>, vector<1x128xf32>,
    } else {
    }
    %c0 = arith.constant 0 : index
    %c0_1 = arith.constant 0 : index
    %c0_2 = arith.constant 0 : index
    %3 = vector.load %arg3[%c0, %c0_1, %c0_2] : memref<1x64x32xf32, #tpu.memory_space<vmem>>, vector<1x64x32xf32>
    %4 = vector.shape_cast %3 : vector<1x64x32xf32> to vector<64x32xf32>
    %c0_3 = arith.constant 0 : index
    %c0_4 = arith.constant 0 : index
    %c0_5 = arith.constant 0 : index
    %5 = vector.load %arg4[%c0_3, %c0_4, %c0_5] : memref<1x8x32xf32, #tpu.memory_space<vmem>>, vector<1x8x32xf32>
    %6 = vector.shape_cast %5 : vector<1x8x32xf32> to vector<8x32xf32>
    %7 = vector.extract_strided_slice %4 {offsets = [8, 0], sizes = [56, 32], strides = [1, 1]} : vector<64x32xf32> to vector<56x32xf32>
    %8 = tpu.concatenate %7, %6 in 0 : vector<56x32xf32>, vector<8x32xf32> -> vector<64x32xf32>
    %c0_6 = arith.constant 0 : index
    %c0_7 = arith.constant 0 : index
    %c0_8 = arith.constant 0 : index
    %9 = vector.load %arg5[%c0_6, %c0_7, %c0_8] : memref<2x32x128xf32, #tpu.memory_space<vmem>>, vector<1x32x128xf32>
    %10 = vector.shape_cast %9 : vector<1x32x128xf32> to vector<32x128xf32>
    %cst = arith.constant dense<0.000000e+00> : vector<64x128xf32>
    %11 = tpu.matmul %4, %10, %cst {dimension_numbers = #tpu.dot_dimension_numbers<[1], [0], [0], [1], [0, 0, 1, 1], [], []>} : vector<64x32xf32>, vector<32x128xf32>, vector<64x128xf32> -> vector<64x128xf32>
    %c1 = arith.constant 1 : index
    %c0_9 = arith.constant 0 : index
    %c0_10 = arith.constant 0 : index
    %12 = vector.load %arg5[%c1, %c0_9, %c0_10] : memref<2x32x128xf32, #tpu.memory_space<vmem>>, vector<1x32x128xf32>
    %13 = vector.shape_cast %12 : vector<1x32x128xf32> to vector<32x128xf32>
    %cst_11 = arith.constant dense<0.000000e+00> : vector<64x128xf32>
    %14 = tpu.matmul %8, %13, %cst_11 {dimension_numbers = #tpu.dot_dimension_numbers<[1], [0], [0], [1], [0, 0, 1, 1], [], []>} : vector<64x32xf32>, vector<32x128xf32>, vector<64x128xf32> -> vector<64x128xf32>
    %15 = arith.addf %11, %14 : vector<64x128xf32>
    %c0_12 = arith.constant 0 : index
    %c0_13 = arith.constant 0 : index
    %c0_14 = arith.constant 0 : index
    %16 = vector.load %arg6[%c0_12, %c0_13, %c0_14] : memref<1x64x128xf32, #tpu.memory_space<vmem>>, vector<1x64x128xf32>
    %17 = vector.shape_cast %16 : vector<1x64x128xf32> to vector<64x128xf32>
    %18 = vector.shape_cast %15 : vector<64x128xf32> to vector<1x64x128xf32>
    tpu.vector_store %arg6[%c0_12, %c0_13, %c0_14], %18 {strides = array<i32>} : memref<1x64x128xf32, #tpu.memory_space<vmem>>, vector<1x64x128xf32>,
    %c0_15 = arith.constant 0 : index
    %c0_16 = arith.constant 0 : index
    %19 = vector.load %arg8[%c0_15, %c0_16] : memref<1x128xf32, #tpu.memory_space<vmem>>, vector<1x128xf32>
    %cst_17 = arith.constant dense<0.000000e+00> : vector<128xf32>
    %20 = vector.multi_reduction <add>, %15, %cst_17 [0] : vector<64x128xf32> to vector<128xf32>
    %21 = vector.shape_cast %20 : vector<128xf32> to vector<1x128xf32>
    %22 = arith.addf %19, %21 : vector<1x128xf32>
    %c0_18 = arith.constant 0 : index
    %c0_19 = arith.constant 0 : index
    %23 = vector.load %arg8[%c0_18, %c0_19] : memref<1x128xf32, #tpu.memory_space<vmem>>, vector<1x128xf32>
    tpu.vector_store %arg8[%c0_18, %c0_19], %22 {strides = array<i32>} : memref<1x128xf32, #tpu.memory_space<vmem>>, vector<1x128xf32>,
    %c0_20 = arith.constant 0 : index
    %c0_21 = arith.constant 0 : index
    %24 = vector.load %arg9[%c0_20, %c0_21] : memref<1x128xf32, #tpu.memory_space<vmem>>, vector<1x128xf32>
    %25 = arith.mulf %15, %15 : vector<64x128xf32>
    %cst_22 = arith.constant dense<0.000000e+00> : vector<128xf32>
    %26 = vector.multi_reduction <add>, %25, %cst_22 [0] : vector<64x128xf32> to vector<128xf32>
    %27 = vector.shape_cast %26 : vector<128xf32> to vector<1x128xf32>
    %28 = arith.addf %24, %27 : vector<1x128xf32>
    %c0_23 = arith.constant 0 : index
    %c0_24 = arith.constant 0 : index
    %29 = vector.load %arg9[%c0_23, %c0_24] : memref<1x128xf32, #tpu.memory_space<vmem>>, vector<1x128xf32>
    tpu.vector_store %arg9[%c0_23, %c0_24], %28 {strides = array<i32>} : memref<1x128xf32, #tpu.memory_space<vmem>>, vector<1x128xf32>,
    %c0_i32_25 = arith.constant 0 : i32
    %30 = arith.cmpi eq, %arg2, %c0_i32_25 : i32
    %31 = arith.extui %30 : i1 to i32
    %c0_i32_26 = arith.constant 0 : i32
    %32 = arith.cmpi ne, %31, %c0_i32_26 : i32
    scf.if %32 {
      %c0_27 = arith.constant 0 : index
      %c0_28 = arith.constant 0 : index
      %33 = vector.load %arg8[%c0_27, %c0_28] : memref<1x128xf32, #tpu.memory_space<vmem>>, vector<1x128xf32>
      %cst_29 = arith.constant 1.562500e-02 : f32
      %34 = vector.broadcast %cst_29 : f32 to vector<1x128xf32>
      %35 = arith.mulf %33, %34 : vector<1x128xf32>
      %c0_30 = arith.constant 0 : index
      %c0_31 = arith.constant 0 : index
      %36 = vector.load %arg9[%c0_30, %c0_31] : memref<1x128xf32, #tpu.memory_space<vmem>>, vector<1x128xf32>
      %cst_32 = arith.constant 1.562500e-02 : f32
      %37 = vector.broadcast %cst_32 : f32 to vector<1x128xf32>
      %38 = arith.mulf %36, %37 : vector<1x128xf32>
      %39 = arith.mulf %35, %35 : vector<1x128xf32>
      %40 = arith.subf %38, %39 : vector<1x128xf32>
      %cst_33 = arith.constant 0.000000e+00 : f32
      %41 = vector.broadcast %cst_33 : f32 to vector<1x128xf32>
      %42 = arith.maximumf %40, %41 : vector<1x128xf32>
      %c0_34 = arith.constant 0 : index
      %c0_35 = arith.constant 0 : index
      %c0_36 = arith.constant 0 : index
      %43 = vector.load %arg7[%c0_34, %c0_35, %c0_36] : memref<1x2x128xf32, #tpu.memory_space<vmem>>, vector<1x1x128xf32>
      %44 = vector.shape_cast %43 : vector<1x1x128xf32> to vector<1x128xf32>
      %45 = vector.shape_cast %35 : vector<1x128xf32> to vector<1x1x128xf32>
      tpu.vector_store %arg7[%c0_34, %c0_35, %c0_36], %45 {strides = array<i32>} : memref<1x2x128xf32, #tpu.memory_space<vmem>>, vector<1x1x128xf32>,
      %cst_37 = arith.constant 9.99999974E-6 : f32
      %46 = vector.broadcast %cst_37 : f32 to vector<1x128xf32>
      %47 = arith.addf %42, %46 : vector<1x128xf32>
      %48 = math.rsqrt %47 : vector<1x128xf32>
      %c0_38 = arith.constant 0 : index
      %c1_39 = arith.constant 1 : index
      %c0_40 = arith.constant 0 : index
      %49 = vector.load %arg7[%c0_38, %c1_39, %c0_40] : memref<1x2x128xf32, #tpu.memory_space<vmem>>, vector<1x1x128xf32>
      %50 = vector.shape_cast %49 : vector<1x1x128xf32> to vector<1x128xf32>
      %51 = vector.shape_cast %48 : vector<1x128xf32> to vector<1x1x128xf32>
      tpu.vector_store %arg7[%c0_38, %c1_39, %c0_40], %51 {strides = array<i32>} : memref<1x2x128xf32, #tpu.memory_space<vmem>>, vector<1x1x128xf32>,
    } else {
    }
    return
  }
  func.func @transform_0(%arg0: i32, %arg1: i32, %arg2: i32) -> (i32, i32, i32) {
    %c0_i32 = arith.constant 0 : i32
    %c0_i32_0 = arith.constant 0 : i32
    return %arg0, %arg2, %c0_i32 : i32, i32, i32
  }
  func.func @transform_1(%arg0: i32, %arg1: i32, %arg2: i32) -> (i32, i32, i32) {
    %c1_i32 = arith.constant 1 : i32
    %0 = arith.addi %arg2, %c1_i32 : i32
    %c8_i32 = arith.constant 8 : i32
    %1 = arith.muli %0, %c8_i32 : i32
    %c0_i32 = arith.constant 0 : i32
    %c0_i32_0 = arith.constant 0 : i32
    return %arg0, %1, %c0_i32 : i32, i32, i32
  }
  func.func @transform_2(%arg0: i32, %arg1: i32, %arg2: i32) -> (i32, i32, i32) {
    %c0_i32 = arith.constant 0 : i32
    %c0_i32_0 = arith.constant 0 : i32
    %c0_i32_1 = arith.constant 0 : i32
    return %c0_i32, %c0_i32_0, %arg1 : i32, i32, i32
  }
  func.func @transform_3(%arg0: i32, %arg1: i32, %arg2: i32) -> (i32, i32, i32) {
    %c0_i32 = arith.constant 0 : i32
    return %arg0, %arg2, %arg1 : i32, i32, i32
  }
  func.func @transform_4(%arg0: i32, %arg1: i32, %arg2: i32) -> (i32, i32, i32) {
    %c0_i32 = arith.constant 0 : i32
    %c0_i32_0 = arith.constant 0 : i32
    return %arg0, %c0_i32, %arg1 : i32, i32, i32
  }
}

</mosaic_0001>

<llo_original>
// kernel: tpu_custom_call.1
$region0: #{tpu_custom_call.1}
  #allocation0 [shape = 'u32[]', space=smem, size = 0x4, offset = 0x4, fixed_abs, tag = 'smem constant byte address 0x4 - core index']
  #allocation1 [shape = 'u32[144,128]{1,0:T(1,128)}', space=vmem, size = 0x12000, scoped, tag = 'internal scratch']
  #allocation2 [shape = 'f32[1,128]{1,0:T(1,128)}', space=vmem, size = 0x200, scoped, tag = 'scratch operand']
  #allocation3 [shape = 'f32[1,128]{1,0:T(1,128)}', space=vmem, size = 0x200, scoped, tag = 'scratch operand']
  %s0 = inlined_call_operand.vmem [shape: f32[2,72,32], index: 0, kind: input, shape index: {}]
  %s1 = inlined_call_operand.vmem [shape: f32[2,72,32], index: 1, kind: input, shape index: {}]
  %s2 = inlined_call_operand.vmem [shape: f32[2,32,128], index: 2, kind: input, shape index: {}]
  %s3 = inlined_call_operand.hbm [shape: f32[2,64,128], index: 3, kind: output, shape index: {0}]
  %s4 = inlined_call_operand.hbm [shape: f32[2,2,128], index: 4, kind: output, shape index: {1}]
  %5 = xla_tuple %s3, %s4
  %s6 = sld [smem:[#allocation0]]
  $region61: #{tpu_custom_call.1} parent=0
    _
  %s8 = ssub.s32 1, %s6
  %s9 = scalar_select 0, %s8, %s6
  $region1: #{tpu_custom_call.1} parent=0
    #allocation4 [shape = 'u8[65536]{0}', space=vmem, size = 0x10000, scoped, tag = 'output window, operand 0']
    #allocation5 [shape = 's32[2]{0}', space=sflag, size = 0x8, scoped, tag = 'scoped memory for tpu_custom_call.1']
    #allocation6 [shape = 'u8[2048]{0}', space=vmem, size = 0x800, scoped, tag = 'output window, operand 1']
    #allocation7 [shape = 's32[2]{0}', space=sflag, size = 0x8, scoped, tag = 'scoped memory for tpu_custom_call.1']
    %10 = vsyncpa [#allocation5], 0
    %s11 = scalar_lea.sflag [#allocation5], 1
    %12 = vsyncpa %s11, 0
    %13 = vsyncpa [#allocation7], 0
    %s14 = scalar_lea.sflag [#allocation7], 1
    %15 = vsyncpa %s14, 0
    loop: start=0, step=1, limit=4
    $region2: #{tpu_custom_call.1} parent=1 // loop_pre_header
      _
    $region3: #{tpu_custom_call.1} parent=1 // loop_header
      %s17 = sphi 0, %s21
      %p18 = scmp.ge.s32.totalorder %s17, 4
      %s24 = sphi 0, %s43
      %s25 = sphi 0, %s39
      %s26 = sphi 0, %s35
      %s27 = sphi 0, %s24
      %s28 = sphi 0, %s25
      %s29 = sphi 0, %s26
      %s30 = sphi 0, %s27
      %s31 = sphi 0, %s28
      %s32 = sphi 0, %s29
      %s48 = sphi 0, %s50
      %s51 = sphi 0, %s48
      %s52 = sphi 0, %s51
      %s68 = sphi 0, %s52
      %s80 = sphi 0, %s82
      %s83 = sphi 0, %s80
      %s84 = sphi 0, %s83
      %s100 = sphi 0, %s84
      %s106 = sphi 0, %s108
      %s109 = sphi 0, %s106
      %s110 = sphi 0, %s109
      %s126 = sphi 0, %s110
      %s136 = sphi 0, %s138
      %s139 = sphi 0, %s136
      %s140 = sphi 0, %s139
      %s156 = sphi 0, %s140
      %s164 = sphi 0, %s166
      %s167 = sphi 0, %s164
      %s168 = sphi 0, %s167
      %s184 = sphi 0, %s168
    $region4: #{tpu_custom_call.1} parent=1 // loop_header_branch
      %20 = sbr.rel (%p18) target = $region8
    $region5: #{tpu_custom_call.1} parent=1 // loop_body
      %s22 = ssub.s32 %s17, 1
      %s23 = ssub.s32 %s17, 2
      %s33 = sadd.s32 1, %s26
      %p34 = scmp.ge.s32.totalorder %s33, 1
      %s35 = scalar_select %p34, 0, %s33
      %s36 = sadd.s32 1, %s25
      %s37 = scalar_select %p34, %s36, %s25
      %p38 = scmp.ge.s32.totalorder %s37, 1
      %s39 = scalar_select %p38, 0, %s37
      %s40 = sadd.s32 1, %s24
      %s41 = scalar_select %p38, %s40, %s24
      %p42 = scmp.ge.s32.totalorder %s41, 2
      %s43 = scalar_select %p42, 0, %s41
      %s44 = ssub.s32 %s24, %s43
      %s45 = ssub.s32 %s26, %s35
      %s46 = sor.u32 %s44, %s45
      %p47 = scmp.eq.s32.totalorder %s46, 0
      %s49 = sadd.s32 %s48, 1
      %s50 = scalar_select %p47, %s48, %s49
      %p53 = pneg %p47
      %p54 = scmp.eq.s32.totalorder %s17, 1
      %p55 = por %p53, %p54
      %p56 = scmp.ne.s32.totalorder %s48, %s51
      %p57 = scmp.eq.s32.totalorder %s17, 0
      %p58 = por %p56, %p57
      %p59 = scmp.ne.s32.totalorder %s48, %s51
      %p60 = scmp.eq.s32.totalorder %s22, 1
      %p61 = por %p59, %p60
      %p62 = scmp.ne.s32.totalorder %s51, %s52
      %p63 = scmp.eq.s32.totalorder %s22, 0
      %p64 = por %p62, %p63
      %p65 = scmp.ne.s32.totalorder %s51, %s52
      %p66 = scmp.eq.s32.totalorder %s23, 1
      %p67 = por %p65, %p66
      %p69 = scmp.ne.s32.totalorder %s52, %s68
      %p70 = scmp.eq.s32.totalorder %s23, 0
      %p71 = por %p69, %p70
      %s72 = sadd.s32 %s26, 1
      %s73 = smul.u32 %s72, 8
      %s74 = sadd.s32 %s35, 1
      %s75 = smul.u32 %s74, 8
      %s76 = ssub.s32 %s24, %s43
      %s77 = ssub.s32 %s73, %s75
      %s78 = sor.u32 %s76, %s77
      %p79 = scmp.eq.s32.totalorder %s78, 0
      %s81 = sadd.s32 %s80, 1
      %s82 = scalar_select %p79, %s80, %s81
      %p85 = pneg %p79
      %p86 = scmp.eq.s32.totalorder %s17, 1
      %p87 = por %p85, %p86
      %p88 = scmp.ne.s32.totalorder %s80, %s83
      %p89 = scmp.eq.s32.totalorder %s17, 0
      %p90 = por %p88, %p89
      %p91 = scmp.ne.s32.totalorder %s80, %s83
      %p92 = scmp.eq.s32.totalorder %s22, 1
      %p93 = por %p91, %p92
      %p94 = scmp.ne.s32.totalorder %s83, %s84
      %p95 = scmp.eq.s32.totalorder %s22, 0
      %p96 = por %p94, %p95
      %p97 = scmp.ne.s32.totalorder %s83, %s84
      %p98 = scmp.eq.s32.totalorder %s23, 1
      %p99 = por %p97, %p98
      %p101 = scmp.ne.s32.totalorder %s84, %s100
      %p102 = scmp.eq.s32.totalorder %s23, 0
      %p103 = por %p101, %p102
      %s104 = ssub.s32 %s25, %s39
      %p105 = scmp.eq.s32.totalorder %s104, 0
      %s107 = sadd.s32 %s106, 1
      %s108 = scalar_select %p105, %s106, %s107
      %p111 = pneg %p105
      %p112 = scmp.eq.s32.totalorder %s17, 1
      %p113 = por %p111, %p112
      %p114 = scmp.ne.s32.totalorder %s106, %s109
      %p115 = scmp.eq.s32.totalorder %s17, 0
      %p116 = por %p114, %p115
      %p117 = scmp.ne.s32.totalorder %s106, %s109
      %p118 = scmp.eq.s32.totalorder %s22, 1
      %p119 = por %p117, %p118
      %p120 = scmp.ne.s32.totalorder %s109, %s110
      %p121 = scmp.eq.s32.totalorder %s22, 0
      %p122 = por %p120, %p121
      %p123 = scmp.ne.s32.totalorder %s109, %s110
      %p124 = scmp.eq.s32.totalorder %s23, 1
      %p125 = por %p123, %p124
      %p127 = scmp.ne.s32.totalorder %s110, %s126
      %p128 = scmp.eq.s32.totalorder %s23, 0
      %p129 = por %p127, %p128
      %s130 = ssub.s32 %s24, %s43
      %s131 = ssub.s32 %s26, %s35
      %s132 = sor.u32 %s130, %s131
      %s133 = ssub.s32 %s25, %s39
      %s134 = sor.u32 %s132, %s133
      %p135 = scmp.eq.s32.totalorder %s134, 0
      %s137 = sadd.s32 %s136, 1
      %s138 = scalar_select %p135, %s136, %s137
      %p141 = pneg %p135
      %p142 = scmp.eq.s32.totalorder %s17, 1
      %p143 = por %p141, %p142
      %p144 = scmp.ne.s32.totalorder %s136, %s139
      %p145 = scmp.eq.s32.totalorder %s17, 0
      %p146 = por %p144, %p145
      %p147 = scmp.ne.s32.totalorder %s136, %s139
      %p148 = scmp.eq.s32.totalorder %s22, 1
      %p149 = por %p147, %p148
      %p150 = scmp.ne.s32.totalorder %s139, %s140
      %p151 = scmp.eq.s32.totalorder %s22, 0
      %p152 = por %p150, %p151
      %p153 = scmp.ne.s32.totalorder %s139, %s140
      %p154 = scmp.eq.s32.totalorder %s23, 1
      %p155 = por %p153, %p154
      %p157 = scmp.ne.s32.totalorder %s140, %s156
      %p158 = scmp.eq.s32.totalorder %s23, 0
      %p159 = por %p157, %p158
      %s160 = ssub.s32 %s24, %s43
      %s161 = ssub.s32 %s25, %s39
      %s162 = sor.u32 %s160, %s161
      %p163 = scmp.eq.s32.totalorder %s162, 0
      %s165 = sadd.s32 %s164, 1
      %s166 = scalar_select %p163, %s164, %s165
      %p169 = pneg %p163
      %p170 = scmp.eq.s32.totalorder %s17, 1
      %p171 = por %p169, %p170
      %p172 = scmp.ne.s32.totalorder %s164, %s167
      %p173 = scmp.eq.s32.totalorder %s17, 0
      %p174 = por %p172, %p173
      %p175 = scmp.ne.s32.totalorder %s164, %s167
      %p176 = scmp.eq.s32.totalorder %s22, 1
      %p177 = por %p175, %p176
      %p178 = scmp.ne.s32.totalorder %s167, %s168
      %p179 = scmp.eq.s32.totalorder %s22, 0
      %p180 = por %p178, %p179
      %p181 = scmp.ne.s32.totalorder %s167, %s168
      %p182 = scmp.eq.s32.totalorder %s23, 1
      %p183 = por %p181, %p182
      %p185 = scmp.ne.s32.totalorder %s168, %s184
      %p186 = scmp.eq.s32.totalorder %s23, 0
      %p187 = por %p185, %p186
      %p188 = scmp.le.s32.totalorder 1, %s17
      %p189 = scmp.lt.s32.totalorder %s17, 3
      %p190 = pnand %p188, %p189
      %p191 = pneg %p190
      // Predicated region
      $region9: #{tpu_custom_call.1} parent=5 // pred_check
        _
      $region10: #{tpu_custom_call.1} parent=5 // pred_check_branch
        %193 = sbr.rel (%p190) target = $region12
      $region11: #{tpu_custom_call.1} parent=5 // pred_region
        %s194 = ssub.s32 %s17, 1
        // Predicated region
        $region13: #{tpu_custom_call.1} parent=11 // pred_check
          %p195 = pneg %p122
        $region14: #{tpu_custom_call.1} parent=11 // pred_check_branch
          %197 = sbr.rel (%p195) target = $region16
        $region15: #{tpu_custom_call.1} parent=11 // pred_region
          %p198 = scmp.lt.s32.totalorder %s28, 0
          %s199 = scalar_select %p198, %s28, 0
          %s200 = smul.addr %s199, 8
          %s201 = scalar_lea.vmem %s2, %s200
        $region16: #{tpu_custom_call.1} parent=11 // pred_fallthru
          _
      $region12: #{tpu_custom_call.1} parent=5 // pred_fallthru
        _
      %p202 = scmp.lt.s32.totalorder %s17, 2
      // Predicated region
      $region17: #{tpu_custom_call.1} parent=5 // pred_check
        %p203 = pneg %p202
      $region18: #{tpu_custom_call.1} parent=5 // pred_check_branch
        %205 = sbr.rel (%p203) target = $region20
      $region19: #{tpu_custom_call.1} parent=5 // pred_region
        // Predicated region
        $region21: #{tpu_custom_call.1} parent=19 // pred_check
          %p206 = pneg %p58
        $region22: #{tpu_custom_call.1} parent=19 // pred_check_branch
          %208 = sbr.rel (%p206) target = $region24
        $region23: #{tpu_custom_call.1} parent=19 // pred_region
          %s209 = smul.u32 8, %s26
          %s210 = ssub.s32 9, %s209
          %p211 = scmp.lt.s32.totalorder %s210, 8
          %s212 = scalar_select %p211, %s210, 8
          %s213 = smul.u32 128, %s212
          %p214 = scmp.lt.s32.totalorder %s24, 1
          %s215 = scalar_select %p214, %s24, 1
          %p216 = scmp.lt.s32.totalorder %s209, 8
          %s217 = scalar_select %p216, %s209, 8
          %s218 = smul.addr %s215, 9
          %s219 = sadd.s32 %s217, %s218
          %s220 = smul.addr %s219, 8
          %s221 = scalar_lea.vmem %s0, %s220
          %s222 = smul.u32 8, %s26
          %s223 = ssub.s32 9, %s222
          %p224 = scmp.lt.s32.totalorder %s223, 8
          %s225 = scalar_select %p224, %s223, 8
          %s226 = smul.u32 128, %s225
        $region24: #{tpu_custom_call.1} parent=19 // pred_fallthru
          _
        // Predicated region
        $region25: #{tpu_custom_call.1} parent=19 // pred_check
          %p227 = pneg %p90
        $region26: #{tpu_custom_call.1} parent=19 // pred_check_branch
          %229 = sbr.rel (%p227) target = $region28
        $region27: #{tpu_custom_call.1} parent=19 // pred_region
          %s230 = sadd.s32 %s26, 1
          %s231 = smul.u32 %s230, 8
          %p232 = scmp.lt.s32.totalorder %s24, 1
          %s233 = scalar_select %p232, %s24, 1
          %p234 = scmp.lt.s32.totalorder %s231, 8
          %s235 = scalar_select %p234, %s231, 8
          %s236 = smul.addr %s233, 9
          %s237 = sadd.s32 %s235, %s236
          %s238 = smul.addr %s237, 8
          %s239 = scalar_lea.vmem %s1, %s238
          %s240 = sadd.s32 %s26, 1
          %s241 = smul.u32 %s240, 8
        $region28: #{tpu_custom_call.1} parent=19 // pred_fallthru
          _
      $region20: #{tpu_custom_call.1} parent=5 // pred_fallthru
        _
      %p242 = scmp.le.s32.totalorder 1, %s17
      %p243 = scmp.lt.s32.totalorder %s17, 3
      %p244 = pnand %p242, %p243
      %p245 = pneg %p244
      // Predicated region
      $region29: #{tpu_custom_call.1} parent=5 // pred_check
        _
      $region30: #{tpu_custom_call.1} parent=5 // pred_check_branch
        %247 = sbr.rel (%p244) target = $region32
      $region31: #{tpu_custom_call.1} parent=5 // pred_region
        %s248 = ssub.s32 %s17, 1
        %s249 = smul.u32 8, %s29
        %s250 = ssub.s32 9, %s249
        %p251 = scmp.lt.s32.totalorder %s250, 8
        %s252 = scalar_select %p251, %s250, 8
        %s253 = smul.u32 128, %s252
        %p254 = scmp.lt.s32.totalorder %s27, 1
        %s255 = scalar_select %p254, %s27, 1
        %p256 = scmp.lt.s32.totalorder %s249, 8
        %s257 = scalar_select %p256, %s249, 8
        %s258 = smul.addr %s255, 9
        %s259 = sadd.s32 %s257, %s258
        %s260 = smul.addr %s259, 8
        %s261 = scalar_lea.vmem %s0, %s260
        %p262 = pneg %p64
        %p263 = pneg %p61
        %s264 = sadd.s32 %s29, 1
        %s265 = smul.u32 %s264, 8
        %p266 = scmp.lt.s32.totalorder %s27, 1
        %s267 = scalar_select %p266, %s27, 1
        %p268 = scmp.lt.s32.totalorder %s265, 8
        %s269 = scalar_select %p268, %s265, 8
        %s270 = smul.addr %s267, 9
        %s271 = sadd.s32 %s269, %s270
        %s272 = smul.addr %s271, 8
        %s273 = scalar_lea.vmem %s1, %s272
        %p274 = pneg %p96
        %p275 = pneg %p93
        %p276 = scmp.lt.s32.totalorder %s28, 0
        %s277 = scalar_select %p276, %s28, 0
        %s278 = smul.addr %s277, 8
        %s279 = scalar_lea.vmem %s2, %s278
        %p280 = pneg %p122
        %p281 = pneg %p119
        %p282 = pneg %p152
        %p283 = pneg %p149
        %s284 = sand.u32 %s139, 1
        %s285 = scalar_lea.sflag [#allocation5], %s284
        %s286 = sand.u32 %s139, 1
        %s287 = smul.addr %s286, 64
        %s288 = scalar_lea.vmem [#allocation4], %s287
        %p289 = pneg %p180
        %p290 = pneg %p177
        %s291 = sand.u32 %s167, 1
        %s292 = scalar_lea.sflag [#allocation7], %s291
        %s293 = sand.u32 %s167, 1
        %s294 = smul.addr %s293, 2
        %s295 = scalar_lea.vmem [#allocation6], %s294
        %s296 = smul.u32 8, %s29
        %s297 = ssub.s32 9, %s296
        %p298 = scmp.lt.s32.totalorder %s297, 8
        %s299 = scalar_select %p298, %s297, 8
        %s300 = smul.u32 128, %s299
        %p301 = scmp.lt.s32.totalorder %s27, 1
        %s302 = scalar_select %p301, %s27, 1
        %p303 = scmp.lt.s32.totalorder %s296, 8
        %s304 = scalar_select %p303, %s296, 8
        %s305 = smul.addr %s302, 9
        %s306 = sadd.s32 %s304, %s305
        %s307 = smul.addr %s306, 8
        %s308 = scalar_lea.vmem %s0, %s307
        %s309 = smul.u32 8, %s29
        %s310 = ssub.s32 9, %s309
        %p311 = scmp.lt.s32.totalorder %s310, 8
        %s312 = scalar_select %p311, %s310, 8
        %s313 = smul.u32 128, %s312
        %s314 = sadd.s32 %s29, 1
        %s315 = smul.u32 %s314, 8
        %p316 = scmp.lt.s32.totalorder %s27, 1
        %s317 = scalar_select %p316, %s27, 1
        %p318 = scmp.lt.s32.totalorder %s315, 8
        %s319 = scalar_select %p318, %s315, 8
        %s320 = smul.addr %s317, 9
        %s321 = sadd.s32 %s319, %s320
        %s322 = smul.addr %s321, 8
        %s323 = scalar_lea.vmem %s1, %s322
        %s324 = sadd.s32 %s29, 1
        %s325 = smul.u32 %s324, 8
        %p326 = scmp.lt.s32.totalorder %s28, 0
        %s327 = scalar_select %p326, %s28, 0
        %s328 = smul.addr %s327, 8
        %s329 = scalar_lea.vmem %s2, %s328
        %s330 = smul.u32 8, %s29
        %p331 = scmp.eq.s32.totalorder %s29, 0
        // Predicated region
        $region33: #{tpu_custom_call.1} parent=31 // pred_check
          %p332 = pneg %p331
        $region34: #{tpu_custom_call.1} parent=31 // pred_check_branch
          %334 = sbr.rel (%p332) target = $region36
        $region35: #{tpu_custom_call.1} parent=31 // pred_region
          %335 = vst [vmem:[#allocation2] sm:$0x1] 0.0
          %336 = vst [vmem:[#allocation3] sm:$0x1] 0.0
        $region36: #{tpu_custom_call.1} parent=31 // pred_fallthru
          _
        %v337 = vld [vmem:[%s308] sm:$0xff]
        %v338 = vld [vmem:[%s308 + $0x8] sm:$0xff]
        %v339 = vld [vmem:[%s308 + $0x10] sm:$0xff]
        %v340 = vld [vmem:[%s308 + $0x18] sm:$0xff]
        %v341 = vld [vmem:[%s308 + $0x20] sm:$0xff]
        %v342 = vld [vmem:[%s308 + $0x28] sm:$0xff]
        %v343 = vld [vmem:[%s308 + $0x30] sm:$0xff]
        %v344 = vld [vmem:[%s308 + $0x38] sm:$0xff]
        %v345 = vld [vmem:[%s323] sm:$0xff]
        %v346 = vld [vmem:[%s329] sm:$0xff]
        %v347 = vld [vmem:[%s329 + $0x8] sm:$0xff]
        %v348 = vld [vmem:[%s329 + $0x10] sm:$0xff]
        %v349 = vld [vmem:[%s329 + $0x18] sm:$0xff]
        %s350 = scalar_lea.vmem %s329, 32
        %v351 = vld [vmem:[%s350] sm:$0xff]
        %v352 = vld [vmem:[%s350 + $0x8] sm:$0xff]
        %v353 = vld [vmem:[%s350 + $0x10] sm:$0xff]
        %v354 = vld [vmem:[%s350 + $0x18] sm:$0xff]
        %vm355 = vcmask 261120
        %v357 = vsel %vm355, %v338, 0
        %v360 = vsel %vm355, %v339, 0
        %v363 = vsel %vm355, %v340, 0
        %v366 = vsel %vm355, %v341, 0
        %v369 = vsel %vm355, %v342, 0
        %v372 = vsel %vm355, %v343, 0
        %v375 = vsel %vm355, %v344, 0
        %v378 = vsel %vm355, %v345, 0
        %380 = vmatprep.subr.mxu0 0.0
        %381 = vmatpush1.msra.mxu0 %v351
        %382 = vmatprep.subr.mxu0 0.0
        %383 = vmatpush1.msra.mxu0 %v352
        %384 = vmatprep.subr.mxu0 0.0
        %385 = vmatpush1.msra.mxu0 %v353
        %386 = vmatprep.subr.mxu0 0.0
        %387 = vmatpush1.msra.mxu0 %v354
        %388 = vmatprep.subr.mxu0 0.0
        %389 = vmatpush1.msra.mxu0 0.0
        %390 = vmatprep.subr.mxu0 0.0
        %391 = vmatpush1.msra.mxu0 0.0
        %392 = vmatprep.subr.mxu0 0.0
        %393 = vmatpush1.msra.mxu0 0.0
        %394 = vmatprep.subr.mxu0 0.0
        %395 = vmatpush1.msra.mxu0 0.0
        %396 = vmatprep.subr.mxu0 0.0
        %397 = vmatpush1.msra.mxu0 0.0
        %398 = vmatprep.subr.mxu0 0.0
        %399 = vmatpush1.msra.mxu0 0.0
        %400 = vmatprep.subr.mxu0 0.0
        %401 = vmatpush1.msra.mxu0 0.0
        %402 = vmatprep.subr.mxu0 0.0
        %403 = vmatpush1.msra.mxu0 0.0
        %404 = vmatprep.subr.mxu0 0.0
        %405 = vmatpush1.msra.mxu0 0.0
        %406 = vmatprep.subr.mxu0 0.0
        %407 = vmatpush1.msra.mxu0 0.0
        %408 = vmatprep.subr.mxu0 0.0
        %409 = vmatpush1.msra.mxu0 0.0
        %410 = vmatprep.subr.mxu0 0.0
        %411 = vmatpush1.msra.mxu0 0.0
        %412 = vmatprep.subr.mxu0 0.0
        %413 = vmatpush1.msra.mxu0 0.0
        %414 = vmatprep.subr.mxu0 0.0
        %415 = vmatpush1.msra.mxu0 0.0
        %416 = vmatprep.subr.mxu0 0.0
        %417 = vmatpush1.msra.mxu0 0.0
        %418 = vmatprep.subr.mxu0 0.0
        %419 = vmatpush1.msra.mxu0 0.0
        %420 = vmatprep.subr.mxu0 0.0
        %421 = vmatpush1.msra.mxu0 0.0
        %422 = vmatprep.subr.mxu0 0.0
        %423 = vmatpush1.msra.mxu0 0.0
        %424 = vmatprep.subr.mxu0 0.0
        %425 = vmatpush1.msra.mxu0 0.0
        %426 = vmatprep.subr.mxu0 0.0
        %427 = vmatpush1.msra.mxu0 0.0
        %428 = vmatprep.subr.mxu0 0.0
        %429 = vmatpush1.msra.mxu0 0.0
        %430 = vmatprep.subr.mxu0 0.0
        %431 = vmatpush1.msra.mxu0 0.0
        %432 = vmatprep.subr.mxu0 0.0
        %433 = vmatpush1.msra.mxu0 0.0
        %434 = vmatprep.subr.mxu0 0.0
        %435 = vmatpush1.msra.mxu0 0.0
        %436 = vmatprep.subr.mxu0 0.0
        %437 = vmatpush1.msra.mxu0 0.0
        %438 = vmatprep.subr.mxu0 0.0
        %439 = vmatpush1.msra.mxu0 0.0
        %440 = vmatprep.subr.mxu0 0.0
        %441 = vmatpush1.msra.mxu0 0.0
        %442 = vmatprep.subr.mxu0 0.0
        %443 = vmatpush1.msra.mxu0 0.0
        %444 = vmatprep.mubr.f32.mxu0 0.0
        %445 = vmatmul.mubr.f32.gmra.mrb[0].mxu0 %v357
        %v446 = vpop.f32.mrb[0].mxu0
        %v447 = vadd.f32 0.0, %v446
        %v448 = vpop.f32.mrb[0].mxu0
        %449 = vmatprep.mubr.f32.mxu0 0.0
        %450 = vmatmul.mubr.f32.gmra.mrb[0].mxu0 %v360
        %v451 = vpop.f32.mrb[0].mxu0
        %v452 = vadd.f32 0.0, %v451
        %v453 = vpop.f32.mrb[0].mxu0
        %454 = vmatprep.mubr.f32.mxu0 0.0
        %455 = vmatmul.mubr.f32.gmra.mrb[0].mxu0 %v363
        %v456 = vpop.f32.mrb[0].mxu0
        %v457 = vadd.f32 0.0, %v456
        %v458 = vpop.f32.mrb[0].mxu0
        %459 = vmatprep.mubr.f32.mxu0 0.0
        %460 = vmatmul.mubr.f32.gmra.mrb[0].mxu0 %v366
        %v461 = vpop.f32.mrb[0].mxu0
        %v462 = vadd.f32 0.0, %v461
        %v463 = vpop.f32.mrb[0].mxu0
        %464 = vmatprep.mubr.f32.mxu0 0.0
        %465 = vmatmul.mubr.f32.gmra.mrb[0].mxu0 %v369
        %v466 = vpop.f32.mrb[0].mxu0
        %v467 = vadd.f32 0.0, %v466
        %v468 = vpop.f32.mrb[0].mxu0
        %469 = vmatprep.mubr.f32.mxu0 0.0
        %470 = vmatmul.mubr.f32.gmra.mrb[0].mxu0 %v372
        %v471 = vpop.f32.mrb[0].mxu0
        %v472 = vadd.f32 0.0, %v471
        %v473 = vpop.f32.mrb[0].mxu0
        %474 = vmatprep.mubr.f32.mxu0 0.0
        %475 = vmatmul.mubr.f32.gmra.mrb[0].mxu0 %v375
        %v476 = vpop.f32.mrb[0].mxu0
        %v477 = vadd.f32 0.0, %v476
        %v478 = vpop.f32.mrb[0].mxu0
        %479 = vmatprep.mubr.f32.mxu0 0.0
        %480 = vmatmul.mubr.f32.gmra.mrb[0].mxu0 %v378
        %v481 = vpop.f32.mrb[0].mxu0
        %v482 = vadd.f32 0.0, %v481
        %v483 = vpop.f32.mrb[0].mxu0
        %484 = vdwg.mxu0
        %v486 = vsel %vm355, %v337, 0
        %488 = vmatprep.subr.mxu0 0.0
        %489 = vmatpush1.msra.mxu0 %v346
        %490 = vmatprep.subr.mxu0 0.0
        %491 = vmatpush1.msra.mxu0 %v347
        %492 = vmatprep.subr.mxu0 0.0
        %493 = vmatpush1.msra.mxu0 %v348
        %494 = vmatprep.subr.mxu0 0.0
        %495 = vmatpush1.msra.mxu0 %v349
        %496 = vmatprep.subr.mxu0 0.0
        %497 = vmatpush1.msra.mxu0 0.0
        %498 = vmatprep.subr.mxu0 0.0
        %499 = vmatpush1.msra.mxu0 0.0
        %500 = vmatprep.subr.mxu0 0.0
        %501 = vmatpush1.msra.mxu0 0.0
        %502 = vmatprep.subr.mxu0 0.0
        %503 = vmatpush1.msra.mxu0 0.0
        %504 = vmatprep.subr.mxu0 0.0
        %505 = vmatpush1.msra.mxu0 0.0
        %506 = vmatprep.subr.mxu0 0.0
        %507 = vmatpush1.msra.mxu0 0.0
        %508 = vmatprep.subr.mxu0 0.0
        %509 = vmatpush1.msra.mxu0 0.0
        %510 = vmatprep.subr.mxu0 0.0
        %511 = vmatpush1.msra.mxu0 0.0
        %512 = vmatprep.subr.mxu0 0.0
        %513 = vmatpush1.msra.mxu0 0.0
        %514 = vmatprep.subr.mxu0 0.0
        %515 = vmatpush1.msra.mxu0 0.0
        %516 = vmatprep.subr.mxu0 0.0
        %517 = vmatpush1.msra.mxu0 0.0
        %518 = vmatprep.subr.mxu0 0.0
        %519 = vmatpush1.msra.mxu0 0.0
        %520 = vmatprep.subr.mxu0 0.0
        %521 = vmatpush1.msra.mxu0 0.0
        %522 = vmatprep.subr.mxu0 0.0
        %523 = vmatpush1.msra.mxu0 0.0
        %524 = vmatprep.subr.mxu0 0.0
        %525 = vmatpush1.msra.mxu0 0.0
        %526 = vmatprep.subr.mxu0 0.0
        %527 = vmatpush1.msra.mxu0 0.0
        %528 = vmatprep.subr.mxu0 0.0
        %529 = vmatpush1.msra.mxu0 0.0
        %530 = vmatprep.subr.mxu0 0.0
        %531 = vmatpush1.msra.mxu0 0.0
        %532 = vmatprep.subr.mxu0 0.0
        %533 = vmatpush1.msra.mxu0 0.0
        %534 = vmatprep.subr.mxu0 0.0
        %535 = vmatpush1.msra.mxu0 0.0
        %536 = vmatprep.subr.mxu0 0.0
        %537 = vmatpush1.msra.mxu0 0.0
        %538 = vmatprep.subr.mxu0 0.0
        %539 = vmatpush1.msra.mxu0 0.0
        %540 = vmatprep.subr.mxu0 0.0
        %541 = vmatpush1.msra.mxu0 0.0
        %542 = vmatprep.subr.mxu0 0.0
        %543 = vmatpush1.msra.mxu0 0.0
        %544 = vmatprep.subr.mxu0 0.0
        %545 = vmatpush1.msra.mxu0 0.0
        %546 = vmatprep.subr.mxu0 0.0
        %547 = vmatpush1.msra.mxu0 0.0
        %548 = vmatprep.subr.mxu0 0.0
        %549 = vmatpush1.msra.mxu0 0.0
        %550 = vmatprep.subr.mxu0 0.0
        %551 = vmatpush1.msra.mxu0 0.0
        %552 = vmatprep.mubr.f32.mxu0 0.0
        %553 = vmatmul.mubr.f32.gmra.mrb[0].mxu0 %v486
        %v554 = vpop.f32.mrb[0].mxu0
        %v555 = vadd.f32 %v447, %v554
        %v556 = vpop.f32.mrb[0].mxu0
        %557 = vmatprep.mubr.f32.mxu0 0.0
        %558 = vmatmul.mubr.f32.gmra.mrb[0].mxu0 %v357
        %v559 = vpop.f32.mrb[0].mxu0
        %v560 = vadd.f32 %v452, %v559
        %v561 = vpop.f32.mrb[0].mxu0
        %562 = vmatprep.mubr.f32.mxu0 0.0
        %563 = vmatmul.mubr.f32.gmra.mrb[0].mxu0 %v360
        %v564 = vpop.f32.mrb[0].mxu0
        %v565 = vadd.f32 %v457, %v564
        %v566 = vpop.f32.mrb[0].mxu0
        %567 = vmatprep.mubr.f32.mxu0 0.0
        %568 = vmatmul.mubr.f32.gmra.mrb[0].mxu0 %v363
        %v569 = vpop.f32.mrb[0].mxu0
        %v570 = vadd.f32 %v462, %v569
        %v571 = vpop.f32.mrb[0].mxu0
        %572 = vmatprep.mubr.f32.mxu0 0.0
        %573 = vmatmul.mubr.f32.gmra.mrb[0].mxu0 %v366
        %v574 = vpop.f32.mrb[0].mxu0
        %v575 = vadd.f32 %v467, %v574
        %v576 = vpop.f32.mrb[0].mxu0
        %577 = vmatprep.mubr.f32.mxu0 0.0
        %578 = vmatmul.mubr.f32.gmra.mrb[0].mxu0 %v369
        %v579 = vpop.f32.mrb[0].mxu0
        %v580 = vadd.f32 %v472, %v579
        %v581 = vpop.f32.mrb[0].mxu0
        %582 = vmatprep.mubr.f32.mxu0 0.0
        %583 = vmatmul.mubr.f32.gmra.mrb[0].mxu0 %v372
        %v584 = vpop.f32.mrb[0].mxu0
        %v585 = vadd.f32 %v477, %v584
        %v586 = vpop.f32.mrb[0].mxu0
        %587 = vmatprep.mubr.f32.mxu0 0.0
        %588 = vmatmul.mubr.f32.gmra.mrb[0].mxu0 %v375
        %v589 = vpop.f32.mrb[0].mxu0
        %v590 = vadd.f32 %v482, %v589
        %v591 = vpop.f32.mrb[0].mxu0
        %592 = vdwg.mxu0
        %593 = vst [vmem:[%s288] sm:$0xff] %v555
        %594 = vst [vmem:[%s288 + $0x8] sm:$0xff] %v560
        %595 = vst [vmem:[%s288 + $0x10] sm:$0xff] %v565
        %596 = vst [vmem:[%s288 + $0x18] sm:$0xff] %v570
        %597 = vst [vmem:[%s288 + $0x20] sm:$0xff] %v575
        %598 = vst [vmem:[%s288 + $0x28] sm:$0xff] %v580
        %599 = vst [vmem:[%s288 + $0x30] sm:$0xff] %v585
        %600 = vst [vmem:[%s288 + $0x38] sm:$0xff] %v590
        %v601 = vld [vmem:[#allocation2] sm:$0x1]
        %v602 = vadd.f32 %v555, %v560
        %v603 = vadd.f32 %v602, %v565
        %v604 = vadd.f32 %v603, %v570
        %v605 = vadd.f32 %v604, %v575
        %v606 = vadd.f32 %v605, %v580
        %v607 = vadd.f32 %v606, %v585
        %v608 = vadd.f32 %v607, %v590
        %v609 = vrot.slane %v608, 4
        %v610 = vadd.f32 %v608, %v609
        %v611 = vrot.slane %v610, 2
        %v612 = vadd.f32 %v610, %v611
        %v613 = vrot.slane %v612, 1
        %v614 = vadd.f32 %v612, %v613
        %v615 = vadd.f32 %v601, %v614
        %616 = vst [vmem:[#allocation2] sm:$0x1] %v615
        %v617 = vld [vmem:[#allocation3] sm:$0x1]
        %v618 = vmul.f32 %v555, %v555
        %v619 = vmul.f32 %v560, %v560
        %v620 = vmul.f32 %v565, %v565
        %v621 = vmul.f32 %v570, %v570
        %v622 = vmul.f32 %v575, %v575
        %v623 = vmul.f32 %v580, %v580
        %v624 = vmul.f32 %v585, %v585
        %v625 = vmul.f32 %v590, %v590
        %v626 = vadd.f32 %v618, %v619
        %v627 = vadd.f32 %v626, %v620
        %v628 = vadd.f32 %v627, %v621
        %v629 = vadd.f32 %v628, %v622
        %v630 = vadd.f32 %v629, %v623
        %v631 = vadd.f32 %v630, %v624
        %v632 = vadd.f32 %v631, %v625
        %v633 = vrot.slane %v632, 4
        %v634 = vadd.f32 %v632, %v633
        %v635 = vrot.slane %v634, 2
        %v636 = vadd.f32 %v634, %v635
        %v637 = vrot.slane %v636, 1
        %v638 = vadd.f32 %v636, %v637
        %v639 = vadd.f32 %v617, %v638
        %640 = vst [vmem:[#allocation3] sm:$0x1] %v639
        // Predicated region
        $region37: #{tpu_custom_call.1} parent=31 // pred_check
          %p641 = pneg %p331
        $region38: #{tpu_custom_call.1} parent=31 // pred_check_branch
          %643 = sbr.rel (%p641) target = $region40
        $region39: #{tpu_custom_call.1} parent=31 // pred_region
          %v644 = vld [vmem:[#allocation2] sm:$0x1]
          %v645 = vmul.f32 %v644, 0.015625
          %v646 = vld [vmem:[#allocation3] sm:$0x1]
          %v647 = vmul.f32 %v646, 0.015625
          %v648 = vmul.f32 %v645, %v645
          %v649 = vsub.f32 %v647, %v648
          %v650 = vmax.f32 %v649, 0.0
          %651 = vst [vmem:[%s295] sm:$0x1] %v645
          %v652 = vadd.f32 %v650, 1e-05
          %v653 = vrsqrt.pop %v652
          %654 = vst [vmem:[%s295 + $0x1] sm:$0x1] %v653
        $region40: #{tpu_custom_call.1} parent=31 // pred_fallthru
          _
        %s655 = sand.u32 %s139, 1
        %s656 = scalar_lea.sflag [#allocation5], %s655
        %s657 = sand.u32 %s139, 1
        %s658 = smul.addr %s657, 64
        %s659 = scalar_lea.vmem [#allocation4], %s658
        %s660 = sand.u32 %s167, 1
        %s661 = scalar_lea.sflag [#allocation7], %s660
        %s662 = sand.u32 %s167, 1
        %s663 = smul.addr %s662, 2
        %s664 = scalar_lea.vmem [#allocation6], %s663
        // Predicated region
        $region41: #{tpu_custom_call.1} parent=31 // pred_check
          %p665 = pneg %p149
        $region42: #{tpu_custom_call.1} parent=31 // pred_check_branch
          %667 = sbr.rel (%p665) target = $region44
        $region43: #{tpu_custom_call.1} parent=31 // pred_region
          %s668 = smul.u32 8, %s29
          %s670 = ssub.s32 1024, 1024
          %671 = vsyncadd %s656, %s670
          %s672 = sadd.s32 %s28, %s668
          %s673 = smul.addr %s27, 8
          %s674 = sadd.s32 %s672, %s673
          %s675 = smul.addr %s674, 128
          %s676 = scalar_lea.hbm %s3, %s675
          %s677 = sshll.u32 %s659, 4
          %s678 = int_to_ptr.vmem [resolvable:$true] %s677
          %683 = dma.vmem_to_hbm [thread:$0]  %s678, 1024, %s676, %s656, 128, 128, 8
        $region44: #{tpu_custom_call.1} parent=31 // pred_fallthru
          _
        // Predicated region
        $region45: #{tpu_custom_call.1} parent=31 // pred_check
          %p684 = pneg %p177
        $region46: #{tpu_custom_call.1} parent=31 // pred_check_branch
          %686 = sbr.rel (%p684) target = $region48
        $region47: #{tpu_custom_call.1} parent=31 // pred_region
          %s688 = ssub.s32 32, 32
          %689 = vsyncadd %s661, %s688
          %s690 = sadd.s32 %s28, %s27
          %s691 = smul.addr %s690, 32
          %s692 = scalar_lea.hbm %s4, %s691
          %s694 = sshll.u32 %s664, 4
          %s695 = int_to_ptr.vmem [resolvable:$true] %s694
          %697 = dma.vmem_to_hbm [thread:$0]  %s695, 32, %s692, %s661
        $region48: #{tpu_custom_call.1} parent=31 // pred_fallthru
          _
      $region32: #{tpu_custom_call.1} parent=5 // pred_fallthru
        _
      %p698 = scmp.le.s32.totalorder 2, %s17
      // Predicated region
      $region49: #{tpu_custom_call.1} parent=5 // pred_check
        %p699 = pneg %p698
      $region50: #{tpu_custom_call.1} parent=5 // pred_check_branch
        %701 = sbr.rel (%p699) target = $region52
      $region51: #{tpu_custom_call.1} parent=5 // pred_region
        %s702 = ssub.s32 %s17, 2
        // Predicated region
        $region53: #{tpu_custom_call.1} parent=51 // pred_check
          %p703 = pneg %p155
        $region54: #{tpu_custom_call.1} parent=51 // pred_check_branch
          %705 = sbr.rel (%p703) target = $region56
        $region55: #{tpu_custom_call.1} parent=51 // pred_region
          %s706 = sand.u32 %s140, 1
          %s707 = scalar_lea.sflag [#allocation5], %s706
          %s708 = sand.u32 %s140, 1
          %s709 = smul.addr %s708, 64
          %s710 = scalar_lea.vmem [#allocation4], %s709
          %711 = dma.done %s707, 1024
        $region56: #{tpu_custom_call.1} parent=51 // pred_fallthru
          _
        // Predicated region
        $region57: #{tpu_custom_call.1} parent=51 // pred_check
          %p712 = pneg %p183
        $region58: #{tpu_custom_call.1} parent=51 // pred_check_branch
          %714 = sbr.rel (%p712) target = $region60
        $region59: #{tpu_custom_call.1} parent=51 // pred_region
          %s715 = sand.u32 %s168, 1
          %s716 = scalar_lea.sflag [#allocation7], %s715
          %s717 = sand.u32 %s168, 1
          %s718 = smul.addr %s717, 2
          %s719 = scalar_lea.vmem [#allocation6], %s718
          %720 = dma.done %s716, 32
        $region60: #{tpu_custom_call.1} parent=51 // pred_fallthru
          _
      $region52: #{tpu_custom_call.1} parent=5 // pred_fallthru
        _
    $region6: #{tpu_custom_call.1} parent=1 // loop_footer
      %s21 = sadd.s32 1, %s17
    $region7: #{tpu_custom_call.1} parent=1 // loop_footer_branch
      %16 = sbr.rel target = $region3
    $region8: #{tpu_custom_call.1} parent=1 // loop_exit
      _
    %721 = vsyncpa [#allocation5], 1
    %s722 = scalar_lea.sflag [#allocation5], 1
    %723 = vsyncpa %s722, 1
    %724 = vsyncpa [#allocation7], 1
    %s725 = scalar_lea.sflag [#allocation7], 1
    %726 = vsyncpa %s725, 1

</llo_original>
